<compile_context>
chip_gen: v5e
topology: v5e:2x2
jax: 0.10.0
libtpu: 0.0.40
codegen_flags: <defaults>
</compile_context>

<pallas_src>
import functools

import jax
import jax.numpy as jnp
from jax.experimental import pallas as pl
from jax.experimental.pallas import tpu as pltpu


OUT_PAD = 128  # lane-dense width for the fused output heads


# ----------------------------------------------------------------------------
# Pallas kernel: full variable-length LSTM + fused, lane-dense output heads.
# ----------------------------------------------------------------------------
def _rnn_kernel(x_ref,      # (T*Bp, D)    f32, time-major, batch-padded
                lens_ref,   # (Bp, H)      int32, per-row sequence length (broadcast)
                wih_ref,    # (D, 4H)      f32, fused input->gate weights (i,f,o,g)
                whh_ref,    # (H, 4H)      f32, fused hidden->gate weights (i,f,o,g)
                b_ref,      # (1, 4H)      f32, bias_ih + bias_hh (fused, reordered)
                wout_ref,   # (H, OUT_PAD) f32, [out1.W^T | out2.W^T | 0...]
                bout_ref,   # (1, OUT_PAD) f32, [out1.b | out2.b | 0...]
                out_ref,    # (Bp, OUT_PAD) f32
                *, T, Bp, H):
    # Hoisted input projection (no serial dependence), kept as a vreg value.
    gx = jnp.dot(x_ref[...], wih_ref[...],
                 preferred_element_type=jnp.float32) + b_ref[...]   # (T*Bp, 4H)

    # Loop-invariant loads hoisted out of the recurrence.
    whh = whh_ref[...]                                               # (H, 4H)
    lens = lens_ref[...]                                             # (Bp, H) int32

    # Recurrent state lives in vregs (8x32 f32 each).
    h = jnp.zeros((Bp, H), jnp.float32)
    c = jnp.zeros((Bp, H), jnp.float32)

    # T is small & static: plain Python unroll -> static slices, static t.
    for t in range(T):
        # One fused-gate MXU matmul per step + precomputed x-projection slice.
        gates = gx[t * Bp:(t + 1) * Bp, :] + jnp.dot(
            h, whh, preferred_element_type=jnp.float32)              # (Bp, 4H)

        # Gate order (i, f, o, g): sigmoid gates contiguous -> one EUP region.
        sig = jax.nn.sigmoid(gates[:, 0:3 * H])
        i_g = sig[:, 0:H]
        f_g = sig[:, H:2 * H]
        o_g = sig[:, 2 * H:3 * H]
        g_g = jnp.tanh(gates[:, 3 * H:4 * H])

        c_new = f_g * c + i_g * g_g
        h_new = o_g * jnp.tanh(c_new)

        # pack_padded_sequence: only rows with t < len advance their state.
        m = lens > t                                                 # (Bp, H) bool
        h = jnp.where(m, h_new, h)
        c = jnp.where(m, c_new, c)

    # Fused, lane-dense output heads: one matmul, one unmasked full-width store.
    out_ref[...] = jnp.dot(h, wout_ref[...],
                           preferred_element_type=jnp.float32) + bout_ref[...]


# ----------------------------------------------------------------------------
# One-time parameter fusion (outside the per-call forward path).
# ----------------------------------------------------------------------------
def prepare_fused_params(params, hidden_size):
    """Fuse/reorder/pad LSTM + head weights once.  Returns arrays only."""
    H = hidden_size
    O = params["w1"].shape[0]
    # PyTorch 4H gate order is (i, f, g, o); reorder columns to (i, f, o, g).
    perm = jnp.concatenate([jnp.arange(0, 2 * H),
                            jnp.arange(3 * H, 4 * H),
                            jnp.arange(2 * H, 3 * H)])
    wih = params["w_ih"].astype(jnp.float32).T[:, perm]              # (D, 4H)
    whh = params["w_hh"].astype(jnp.float32).T[:, perm]              # (H, 4H)
    b = ((params["b_ih"] + params["b_hh"]).astype(jnp.float32)[perm]
         .reshape(1, 4 * H))                                         # (1, 4H)
    # Lane-dense (zero-padded) fused output heads.
    wout = jnp.zeros((H, OUT_PAD), jnp.float32)
    wout = wout.at[:, 0:O].set(params["w1"].T.astype(jnp.float32))
    wout = wout.at[:, O:2 * O].set(params["w2"].T.astype(jnp.float32))
    bout = jnp.zeros((1, OUT_PAD), jnp.float32)
    bout = bout.at[0, 0:O].set(params["b1"].astype(jnp.float32))
    bout = bout.at[0, O:2 * O].set(params["b2"].astype(jnp.float32))
    return {"wih": wih, "whh": whh, "b": b, "wout": wout, "bout": bout}


# ----------------------------------------------------------------------------
# Jitted forward wrapper (only tiny per-call data prep remains here).
# ----------------------------------------------------------------------------
@functools.partial(jax.jit, static_argnames=("hidden_size", "output_size"))
def rnn_model_forward(x, input_lens, fused, *, hidden_size, output_size):
    """x: (B, T, D) float32 (batch_first, like PyTorch); input_lens: (B,) int32."""
    B, T, D = x.shape
    H = hidden_size
    O = output_size

    # Pad batch to a sublane multiple of 8 (padded rows get length 0).
    Bp = max(8, ((B + 7) // 8) * 8)

    # Time-major, batch-padded, flattened input (tiny per-call reshuffle).
    x_tbd = jnp.transpose(x, (1, 0, 2)).astype(jnp.float32)          # (T, B, D)
    x_tbd = jnp.pad(x_tbd, ((0, 0), (0, Bp - B), (0, 0)))            # (T, Bp, D)
    x_flat = x_tbd.reshape(T * Bp, D)

    # Full-lane-width length tensor so in-kernel gating is a plain VPU compare.
    lens_p = jnp.pad(input_lens.astype(jnp.int32), (0, Bp - B))      # (Bp,)
    lens_bh = jnp.broadcast_to(lens_p[:, None], (Bp, H))             # (Bp, H)

    kernel = functools.partial(_rnn_kernel, T=T, Bp=Bp, H=H)
    vmem = pl.BlockSpec(memory_space=pltpu.MemorySpace.VMEM)
    out = pl.pallas_call(
        kernel,
        out_shape=jax.ShapeDtypeStruct((Bp, OUT_PAD), jnp.float32),
        in_specs=[vmem] * 7,
        out_specs=vmem,
    )(x_flat, lens_bh, fused["wih"], fused["whh"], fused["b"],
      fused["wout"], fused["bout"])

    out1 = out[:B, 0:O]
    out2 = out[:B, O:2 * O]
    if O == 1:  # matches torch .squeeze(dim=1)
        return out1[:, 0], out2[:, 0]
    return out1, out2


# ----------------------------------------------------------------------------
# Pure-JAX reference (mirrors nn.LSTM + pack_padded_sequence semantics)
# ----------------------------------------------------------------------------
def rnn_model_reference(x, input_lens, params, hidden_size):
    B, T, D = x.shape
    H = hidden_size
    w_ih, w_hh = params["w_ih"], params["w_hh"]
    bias = params["b_ih"] + params["b_hh"]
    h = jnp.zeros((B, H), jnp.float32)
    c = jnp.zeros((B, H), jnp.float32)
    for t in range(T):
        xt = x[:, t, :]
        gates = xt @ w_ih.T + h @ w_hh.T + bias
        i_g = jax.nn.sigmoid(gates[:, 0:H])
        f_g = jax.nn.sigmoid(gates[:, H:2 * H])
        g_g = jnp.tanh(gates[:, 2 * H:3 * H])
        o_g = jax.nn.sigmoid(gates[:, 3 * H:4 * H])
        c_new = f_g * c + i_g * g_g
        h_new = o_g * jnp.tanh(c_new)
        m = (input_lens > t)[:, None]
        h = jnp.where(m, h_new, h)
        c = jnp.where(m, c_new, c)
    out1 = h @ params["w1"].T + params["b1"]
    out2 = h @ params["w2"].T + params["b2"]
    return out1[:, 0], out2[:, 0]


# ----------------------------------------------------------------------------
# Deterministic parameter initialization (shapes per RNNModel.__init__)
# ----------------------------------------------------------------------------
def init_params(key, input_size, hidden_size, output_size, init_range=0.1):
    H = hidden_size
    k = 1.0 / jnp.sqrt(jnp.float32(H))   # PyTorch LSTM default init scale
    keys = jax.random.split(key, 6)
    params = {
        "w_ih": jax.random.uniform(keys[0], (4 * H, input_size), jnp.float32, -k, k),
        "w_hh": jax.random.uniform(keys[1], (4 * H, H), jnp.float32, -k, k),
        "b_ih": jax.random.uniform(keys[2], (4 * H,), jnp.float32, -k, k),
        "b_hh": jax.random.uniform(keys[3], (4 * H,), jnp.float32, -k, k),
        # init_weights(): out weights uniform(-0.1, 0.1), biases zero
        "w1": jax.random.uniform(keys[4], (output_size, H), jnp.float32,
                                 -init_range, init_range),
        "b1": jnp.zeros((output_size,), jnp.float32),
        "w2": jax.random.uniform(keys[5], (output_size, H), jnp.float32,
                                 -init_range, init_range),
        "b2": jnp.zeros((output_size,), jnp.float32),
    }
    return params


if __name__ == "__main__":
    # DIM == 3 case: 3D hits, hidden=32, one scalar parameter per head.
    INPUT_SIZE, HIDDEN_SIZE, OUTPUT_SIZE = 3, 32, 1
    B, T = 4, 8

    key = jax.random.PRNGKey(0)
    kx, kp = jax.random.split(key)
    x = jax.random.normal(kx, (B, T, INPUT_SIZE), jnp.float32)
    input_lens = jnp.array([8, 5, 3, 6], dtype=jnp.int32)   # variable lengths
    params = init_params(kp, INPUT_SIZE, HIDDEN_SIZE, OUTPUT_SIZE)

    # One-time weight fusion / layout prep, outside the per-call forward path.
    fused = prepare_fused_params(params, HIDDEN_SIZE)
    fused = jax.tree_util.tree_map(jax.block_until_ready, fused)

    out1, out2 = rnn_model_forward(x, input_lens, fused,
                                   hidden_size=HIDDEN_SIZE,
                                   output_size=OUTPUT_SIZE)
    jax.block_until_ready((out1, out2))

    ref1, ref2 = rnn_model_reference(x, input_lens, params, HIDDEN_SIZE)
    assert jnp.allclose(out1, ref1, atol=1e-5, rtol=1e-5), (out1, ref1)
    assert jnp.allclose(out2, ref2, atol=1e-5, rtol=1e-5), (out2, ref2)

    print("KERNEL_OK")
</pallas_src>

<mosaic_0001>
module attributes {stable_mosaic.version = 11 : i64} {
  func.func @_rnn_kernel(%arg0: memref<64x3xf32, #tpu.memory_space<vmem>>, %arg1: memref<8x32xi32, #tpu.memory_space<vmem>>, %arg2: memref<3x128xf32, #tpu.memory_space<vmem>>, %arg3: memref<32x128xf32, #tpu.memory_space<vmem>>, %arg4: memref<1x128xf32, #tpu.memory_space<vmem>>, %arg5: memref<32x128xf32, #tpu.memory_space<vmem>>, %arg6: memref<1x128xf32, #tpu.memory_space<vmem>>, %arg7: memref<8x128xf32, #tpu.memory_space<vmem>>) attributes {dimension_semantics = [], scalar_prefetch = 0 : i64, scratch_operands = 0 : i64, tpu.core_type = #tpu.core_type<tc>} {
    %c0 = arith.constant 0 : index
    %c0_0 = arith.constant 0 : index
    %0 = vector.load %arg0[%c0, %c0_0] : memref<64x3xf32, #tpu.memory_space<vmem>>, vector<64x3xf32>
    %c0_1 = arith.constant 0 : index
    %c0_2 = arith.constant 0 : index
    %1 = vector.load %arg2[%c0_1, %c0_2] : memref<3x128xf32, #tpu.memory_space<vmem>>, vector<3x128xf32>
    %cst = arith.constant dense<0.000000e+00> : vector<64x128xf32>
    %2 = tpu.matmul %0, %1, %cst {dimension_numbers = #tpu.dot_dimension_numbers<[1], [0], [0], [1], [0, 0, 1, 1], [], []>} : vector<64x3xf32>, vector<3x128xf32>, vector<64x128xf32> -> vector<64x128xf32>
    %c0_3 = arith.constant 0 : index
    %c0_4 = arith.constant 0 : index
    %3 = vector.load %arg4[%c0_3, %c0_4] : memref<1x128xf32, #tpu.memory_space<vmem>>, vector<1x128xf32>
    %4 = vector.broadcast %3 : vector<1x128xf32> to vector<64x128xf32>
    %5 = arith.addf %2, %4 : vector<64x128xf32>
    %c0_5 = arith.constant 0 : index
    %c0_6 = arith.constant 0 : index
    %6 = vector.load %arg3[%c0_5, %c0_6] : memref<32x128xf32, #tpu.memory_space<vmem>>, vector<32x128xf32>
    %c0_7 = arith.constant 0 : index
    %c0_8 = arith.constant 0 : index
    %7 = vector.load %arg1[%c0_7, %c0_8] : memref<8x32xi32, #tpu.memory_space<vmem>>, vector<8x32xi32>
    %cst_9 = arith.constant 0.000000e+00 : f32
    %8 = vector.broadcast %cst_9 : f32 to vector<8x32xf32>
    %cst_10 = arith.constant 0.000000e+00 : f32
    %9 = vector.broadcast %cst_10 : f32 to vector<8x32xf32>
    %10 = vector.extract_strided_slice %5 {offsets = [0, 0], sizes = [8, 128], strides = [1, 1]} : vector<64x128xf32> to vector<8x128xf32>
    %cst_11 = arith.constant dense<0.000000e+00> : vector<8x128xf32>
    %11 = tpu.matmul %8, %6, %cst_11 {dimension_numbers = #tpu.dot_dimension_numbers<[1], [0], [0], [1], [0, 0, 1, 1], [], []>} : vector<8x32xf32>, vector<32x128xf32>, vector<8x128xf32> -> vector<8x128xf32>
    %12 = arith.addf %10, %11 : vector<8x128xf32>
    %13 = vector.extract_strided_slice %12 {offsets = [0, 0], sizes = [8, 96], strides = [1, 1]} : vector<8x128xf32> to vector<8x96xf32>
    %14 = arith.negf %13 : vector<8x96xf32>
    %15 = math.exp %14 : vector<8x96xf32>
    %cst_12 = arith.constant 1.000000e+00 : f32
    %16 = vector.broadcast %cst_12 : f32 to vector<8x96xf32>
    %17 = arith.addf %16, %15 : vector<8x96xf32>
    %18 = arith.divf %16, %17 : vector<8x96xf32>
    %19 = vector.extract_strided_slice %18 {offsets = [0, 0], sizes = [8, 32], strides = [1, 1]} : vector<8x96xf32> to vector<8x32xf32>
    %20 = vector.extract_strided_slice %18 {offsets = [0, 32], sizes = [8, 32], strides = [1, 1]} : vector<8x96xf32> to vector<8x32xf32>
    %21 = vector.extract_strided_slice %18 {offsets = [0, 64], sizes = [8, 32], strides = [1, 1]} : vector<8x96xf32> to vector<8x32xf32>
    %22 = vector.extract_strided_slice %12 {offsets = [0, 96], sizes = [8, 32], strides = [1, 1]} : vector<8x128xf32> to vector<8x32xf32>
    %23 = math.tanh %22 : vector<8x32xf32>
    %24 = arith.mulf %20, %9 : vector<8x32xf32>
    %25 = arith.mulf %19, %23 : vector<8x32xf32>
    %26 = arith.addf %24, %25 : vector<8x32xf32>
    %27 = math.tanh %26 : vector<8x32xf32>
    %28 = arith.mulf %21, %27 : vector<8x32xf32>
    %c0_i32 = arith.constant 0 : i32
    %29 = vector.broadcast %c0_i32 : i32 to vector<8x32xi32>
    %30 = arith.cmpi sgt, %7, %29 : vector<8x32xi32>
    %31 = arith.select %30, %28, %8 : vector<8x32xi1>, vector<8x32xf32>
    %32 = arith.select %30, %26, %9 : vector<8x32xi1>, vector<8x32xf32>
    %33 = vector.extract_strided_slice %5 {offsets = [8, 0], sizes = [8, 128], strides = [1, 1]} : vector<64x128xf32> to vector<8x128xf32>
    %cst_13 = arith.constant dense<0.000000e+00> : vector<8x128xf32>
    %34 = tpu.matmul %31, %6, %cst_13 {dimension_numbers = #tpu.dot_dimension_numbers<[1], [0], [0], [1], [0, 0, 1, 1], [], []>} : vector<8x32xf32>, vector<32x128xf32>, vector<8x128xf32> -> vector<8x128xf32>
    %35 = arith.addf %33, %34 : vector<8x128xf32>
    %36 = vector.extract_strided_slice %35 {offsets = [0, 0], sizes = [8, 96], strides = [1, 1]} : vector<8x128xf32> to vector<8x96xf32>
    %37 = arith.negf %36 : vector<8x96xf32>
    %38 = math.exp %37 : vector<8x96xf32>
    %cst_14 = arith.constant 1.000000e+00 : f32
    %39 = vector.broadcast %cst_14 : f32 to vector<8x96xf32>
    %40 = arith.addf %39, %38 : vector<8x96xf32>
    %41 = arith.divf %39, %40 : vector<8x96xf32>
    %42 = vector.extract_strided_slice %41 {offsets = [0, 0], sizes = [8, 32], strides = [1, 1]} : vector<8x96xf32> to vector<8x32xf32>
    %43 = vector.extract_strided_slice %41 {offsets = [0, 32], sizes = [8, 32], strides = [1, 1]} : vector<8x96xf32> to vector<8x32xf32>
    %44 = vector.extract_strided_slice %41 {offsets = [0, 64], sizes = [8, 32], strides = [1, 1]} : vector<8x96xf32> to vector<8x32xf32>
    %45 = vector.extract_strided_slice %35 {offsets = [0, 96], sizes = [8, 32], strides = [1, 1]} : vector<8x128xf32> to vector<8x32xf32>
    %46 = math.tanh %45 : vector<8x32xf32>
    %47 = arith.mulf %43, %32 : vector<8x32xf32>
    %48 = arith.mulf %42, %46 : vector<8x32xf32>
    %49 = arith.addf %47, %48 : vector<8x32xf32>
    %50 = math.tanh %49 : vector<8x32xf32>
    %51 = arith.mulf %44, %50 : vector<8x32xf32>
    %c1_i32 = arith.constant 1 : i32
    %52 = vector.broadcast %c1_i32 : i32 to vector<8x32xi32>
    %53 = arith.cmpi sgt, %7, %52 : vector<8x32xi32>
    %54 = arith.select %53, %51, %31 : vector<8x32xi1>, vector<8x32xf32>
    %55 = arith.select %53, %49, %32 : vector<8x32xi1>, vector<8x32xf32>
    %56 = vector.extract_strided_slice %5 {offsets = [16, 0], sizes = [8, 128], strides = [1, 1]} : vector<64x128xf32> to vector<8x128xf32>
    %cst_15 = arith.constant dense<0.000000e+00> : vector<8x128xf32>
    %57 = tpu.matmul %54, %6, %cst_15 {dimension_numbers = #tpu.dot_dimension_numbers<[1], [0], [0], [1], [0, 0, 1, 1], [], []>} : vector<8x32xf32>, vector<32x128xf32>, vector<8x128xf32> -> vector<8x128xf32>
    %58 = arith.addf %56, %57 : vector<8x128xf32>
    %59 = vector.extract_strided_slice %58 {offsets = [0, 0], sizes = [8, 96], strides = [1, 1]} : vector<8x128xf32> to vector<8x96xf32>
    %60 = arith.negf %59 : vector<8x96xf32>
    %61 = math.exp %60 : vector<8x96xf32>
    %cst_16 = arith.constant 1.000000e+00 : f32
    %62 = vector.broadcast %cst_16 : f32 to vector<8x96xf32>
    %63 = arith.addf %62, %61 : vector<8x96xf32>
    %64 = arith.divf %62, %63 : vector<8x96xf32>
    %65 = vector.extract_strided_slice %64 {offsets = [0, 0], sizes = [8, 32], strides = [1, 1]} : vector<8x96xf32> to vector<8x32xf32>
    %66 = vector.extract_strided_slice %64 {offsets = [0, 32], sizes = [8, 32], strides = [1, 1]} : vector<8x96xf32> to vector<8x32xf32>
    %67 = vector.extract_strided_slice %64 {offsets = [0, 64], sizes = [8, 32], strides = [1, 1]} : vector<8x96xf32> to vector<8x32xf32>
    %68 = vector.extract_strided_slice %58 {offsets = [0, 96], sizes = [8, 32], strides = [1, 1]} : vector<8x128xf32> to vector<8x32xf32>
    %69 = math.tanh %68 : vector<8x32xf32>
    %70 = arith.mulf %66, %55 : vector<8x32xf32>
    %71 = arith.mulf %65, %69 : vector<8x32xf32>
    %72 = arith.addf %70, %71 : vector<8x32xf32>
    %73 = math.tanh %72 : vector<8x32xf32>
    %74 = arith.mulf %67, %73 : vector<8x32xf32>
    %c2_i32 = arith.constant 2 : i32
    %75 = vector.broadcast %c2_i32 : i32 to vector<8x32xi32>
    %76 = arith.cmpi sgt, %7, %75 : vector<8x32xi32>
    %77 = arith.select %76, %74, %54 : vector<8x32xi1>, vector<8x32xf32>
    %78 = arith.select %76, %72, %55 : vector<8x32xi1>, vector<8x32xf32>
    %79 = vector.extract_strided_slice %5 {offsets = [24, 0], sizes = [8, 128], strides = [1, 1]} : vector<64x128xf32> to vector<8x128xf32>
    %cst_17 = arith.constant dense<0.000000e+00> : vector<8x128xf32>
    %80 = tpu.matmul %77, %6, %cst_17 {dimension_numbers = #tpu.dot_dimension_numbers<[1], [0], [0], [1], [0, 0, 1, 1], [], []>} : vector<8x32xf32>, vector<32x128xf32>, vector<8x128xf32> -> vector<8x128xf32>
    %81 = arith.addf %79, %80 : vector<8x128xf32>
    %82 = vector.extract_strided_slice %81 {offsets = [0, 0], sizes = [8, 96], strides = [1, 1]} : vector<8x128xf32> to vector<8x96xf32>
    %83 = arith.negf %82 : vector<8x96xf32>
    %84 = math.exp %83 : vector<8x96xf32>
    %cst_18 = arith.constant 1.000000e+00 : f32
    %85 = vector.broadcast %cst_18 : f32 to vector<8x96xf32>
    %86 = arith.addf %85, %84 : vector<8x96xf32>
    %87 = arith.divf %85, %86 : vector<8x96xf32>
    %88 = vector.extract_strided_slice %87 {offsets = [0, 0], sizes = [8, 32], strides = [1, 1]} : vector<8x96xf32> to vector<8x32xf32>
    %89 = vector.extract_strided_slice %87 {offsets = [0, 32], sizes = [8, 32], strides = [1, 1]} : vector<8x96xf32> to vector<8x32xf32>
    %90 = vector.extract_strided_slice %87 {offsets = [0, 64], sizes = [8, 32], strides = [1, 1]} : vector<8x96xf32> to vector<8x32xf32>
    %91 = vector.extract_strided_slice %81 {offsets = [0, 96], sizes = [8, 32], strides = [1, 1]} : vector<8x128xf32> to vector<8x32xf32>
    %92 = math.tanh %91 : vector<8x32xf32>
    %93 = arith.mulf %89, %78 : vector<8x32xf32>
    %94 = arith.mulf %88, %92 : vector<8x32xf32>
    %95 = arith.addf %93, %94 : vector<8x32xf32>
    %96 = math.tanh %95 : vector<8x32xf32>
    %97 = arith.mulf %90, %96 : vector<8x32xf32>
    %c3_i32 = arith.constant 3 : i32
    %98 = vector.broadcast %c3_i32 : i32 to vector<8x32xi32>
    %99 = arith.cmpi sgt, %7, %98 : vector<8x32xi32>
    %100 = arith.select %99, %97, %77 : vector<8x32xi1>, vector<8x32xf32>
    %101 = arith.select %99, %95, %78 : vector<8x32xi1>, vector<8x32xf32>
    %102 = vector.extract_strided_slice %5 {offsets = [32, 0], sizes = [8, 128], strides = [1, 1]} : vector<64x128xf32> to vector<8x128xf32>
    %cst_19 = arith.constant dense<0.000000e+00> : vector<8x128xf32>
    %103 = tpu.matmul %100, %6, %cst_19 {dimension_numbers = #tpu.dot_dimension_numbers<[1], [0], [0], [1], [0, 0, 1, 1], [], []>} : vector<8x32xf32>, vector<32x128xf32>, vector<8x128xf32> -> vector<8x128xf32>
    %104 = arith.addf %102, %103 : vector<8x128xf32>
    %105 = vector.extract_strided_slice %104 {offsets = [0, 0], sizes = [8, 96], strides = [1, 1]} : vector<8x128xf32> to vector<8x96xf32>
    %106 = arith.negf %105 : vector<8x96xf32>
    %107 = math.exp %106 : vector<8x96xf32>
    %cst_20 = arith.constant 1.000000e+00 : f32
    %108 = vector.broadcast %cst_20 : f32 to vector<8x96xf32>
    %109 = arith.addf %108, %107 : vector<8x96xf32>
    %110 = arith.divf %108, %109 : vector<8x96xf32>
    %111 = vector.extract_strided_slice %110 {offsets = [0, 0], sizes = [8, 32], strides = [1, 1]} : vector<8x96xf32> to vector<8x32xf32>
    %112 = vector.extract_strided_slice %110 {offsets = [0, 32], sizes = [8, 32], strides = [1, 1]} : vector<8x96xf32> to vector<8x32xf32>
    %113 = vector.extract_strided_slice %110 {offsets = [0, 64], sizes = [8, 32], strides = [1, 1]} : vector<8x96xf32> to vector<8x32xf32>
    %114 = vector.extract_strided_slice %104 {offsets = [0, 96], sizes = [8, 32], strides = [1, 1]} : vector<8x128xf32> to vector<8x32xf32>
    %115 = math.tanh %114 : vector<8x32xf32>
    %116 = arith.mulf %112, %101 : vector<8x32xf32>
    %117 = arith.mulf %111, %115 : vector<8x32xf32>
    %118 = arith.addf %116, %117 : vector<8x32xf32>
    %119 = math.tanh %118 : vector<8x32xf32>
    %120 = arith.mulf %113, %119 : vector<8x32xf32>
    %c4_i32 = arith.constant 4 : i32
    %121 = vector.broadcast %c4_i32 : i32 to vector<8x32xi32>
    %122 = arith.cmpi sgt, %7, %121 : vector<8x32xi32>
    %123 = arith.select %122, %120, %100 : vector<8x32xi1>, vector<8x32xf32>
    %124 = arith.select %122, %118, %101 : vector<8x32xi1>, vector<8x32xf32>
    %125 = vector.extract_strided_slice %5 {offsets = [40, 0], sizes = [8, 128], strides = [1, 1]} : vector<64x128xf32> to vector<8x128xf32>
    %cst_21 = arith.constant dense<0.000000e+00> : vector<8x128xf32>
    %126 = tpu.matmul %123, %6, %cst_21 {dimension_numbers = #tpu.dot_dimension_numbers<[1], [0], [0], [1], [0, 0, 1, 1], [], []>} : vector<8x32xf32>, vector<32x128xf32>, vector<8x128xf32> -> vector<8x128xf32>
    %127 = arith.addf %125, %126 : vector<8x128xf32>
    %128 = vector.extract_strided_slice %127 {offsets = [0, 0], sizes = [8, 96], strides = [1, 1]} : vector<8x128xf32> to vector<8x96xf32>
    %129 = arith.negf %128 : vector<8x96xf32>
    %130 = math.exp %129 : vector<8x96xf32>
    %cst_22 = arith.constant 1.000000e+00 : f32
    %131 = vector.broadcast %cst_22 : f32 to vector<8x96xf32>
    %132 = arith.addf %131, %130 : vector<8x96xf32>
    %133 = arith.divf %131, %132 : vector<8x96xf32>
    %134 = vector.extract_strided_slice %133 {offsets = [0, 0], sizes = [8, 32], strides = [1, 1]} : vector<8x96xf32> to vector<8x32xf32>
    %135 = vector.extract_strided_slice %133 {offsets = [0, 32], sizes = [8, 32], strides = [1, 1]} : vector<8x96xf32> to vector<8x32xf32>
    %136 = vector.extract_strided_slice %133 {offsets = [0, 64], sizes = [8, 32], strides = [1, 1]} : vector<8x96xf32> to vector<8x32xf32>
    %137 = vector.extract_strided_slice %127 {offsets = [0, 96], sizes = [8, 32], strides = [1, 1]} : vector<8x128xf32> to vector<8x32xf32>
    %138 = math.tanh %137 : vector<8x32xf32>
    %139 = arith.mulf %135, %124 : vector<8x32xf32>
    %140 = arith.mulf %134, %138 : vector<8x32xf32>
    %141 = arith.addf %139, %140 : vector<8x32xf32>
    %142 = math.tanh %141 : vector<8x32xf32>
    %143 = arith.mulf %136, %142 : vector<8x32xf32>
    %c5_i32 = arith.constant 5 : i32
    %144 = vector.broadcast %c5_i32 : i32 to vector<8x32xi32>
    %145 = arith.cmpi sgt, %7, %144 : vector<8x32xi32>
    %146 = arith.select %145, %143, %123 : vector<8x32xi1>, vector<8x32xf32>
    %147 = arith.select %145, %141, %124 : vector<8x32xi1>, vector<8x32xf32>
    %148 = vector.extract_strided_slice %5 {offsets = [48, 0], sizes = [8, 128], strides = [1, 1]} : vector<64x128xf32> to vector<8x128xf32>
    %cst_23 = arith.constant dense<0.000000e+00> : vector<8x128xf32>
    %149 = tpu.matmul %146, %6, %cst_23 {dimension_numbers = #tpu.dot_dimension_numbers<[1], [0], [0], [1], [0, 0, 1, 1], [], []>} : vector<8x32xf32>, vector<32x128xf32>, vector<8x128xf32> -> vector<8x128xf32>
    %150 = arith.addf %148, %149 : vector<8x128xf32>
    %151 = vector.extract_strided_slice %150 {offsets = [0, 0], sizes = [8, 96], strides = [1, 1]} : vector<8x128xf32> to vector<8x96xf32>
    %152 = arith.negf %151 : vector<8x96xf32>
    %153 = math.exp %152 : vector<8x96xf32>
    %cst_24 = arith.constant 1.000000e+00 : f32
    %154 = vector.broadcast %cst_24 : f32 to vector<8x96xf32>
    %155 = arith.addf %154, %153 : vector<8x96xf32>
    %156 = arith.divf %154, %155 : vector<8x96xf32>
    %157 = vector.extract_strided_slice %156 {offsets = [0, 0], sizes = [8, 32], strides = [1, 1]} : vector<8x96xf32> to vector<8x32xf32>
    %158 = vector.extract_strided_slice %156 {offsets = [0, 32], sizes = [8, 32], strides = [1, 1]} : vector<8x96xf32> to vector<8x32xf32>
    %159 = vector.extract_strided_slice %156 {offsets = [0, 64], sizes = [8, 32], strides = [1, 1]} : vector<8x96xf32> to vector<8x32xf32>
    %160 = vector.extract_strided_slice %150 {offsets = [0, 96], sizes = [8, 32], strides = [1, 1]} : vector<8x128xf32> to vector<8x32xf32>
    %161 = math.tanh %160 : vector<8x32xf32>
    %162 = arith.mulf %158, %147 : vector<8x32xf32>
    %163 = arith.mulf %157, %161 : vector<8x32xf32>
    %164 = arith.addf %162, %163 : vector<8x32xf32>
    %165 = math.tanh %164 : vector<8x32xf32>
    %166 = arith.mulf %159, %165 : vector<8x32xf32>
    %c6_i32 = arith.constant 6 : i32
    %167 = vector.broadcast %c6_i32 : i32 to vector<8x32xi32>
    %168 = arith.cmpi sgt, %7, %167 : vector<8x32xi32>
    %169 = arith.select %168, %166, %146 : vector<8x32xi1>, vector<8x32xf32>
    %170 = arith.select %168, %164, %147 : vector<8x32xi1>, vector<8x32xf32>
    %171 = vector.extract_strided_slice %5 {offsets = [56, 0], sizes = [8, 128], strides = [1, 1]} : vector<64x128xf32> to vector<8x128xf32>
    %cst_25 = arith.constant dense<0.000000e+00> : vector<8x128xf32>
    %172 = tpu.matmul %169, %6, %cst_25 {dimension_numbers = #tpu.dot_dimension_numbers<[1], [0], [0], [1], [0, 0, 1, 1], [], []>} : vector<8x32xf32>, vector<32x128xf32>, vector<8x128xf32> -> vector<8x128xf32>
    %173 = arith.addf %171, %172 : vector<8x128xf32>
    %174 = vector.extract_strided_slice %173 {offsets = [0, 0], sizes = [8, 96], strides = [1, 1]} : vector<8x128xf32> to vector<8x96xf32>
    %175 = arith.negf %174 : vector<8x96xf32>
    %176 = math.exp %175 : vector<8x96xf32>
    %cst_26 = arith.constant 1.000000e+00 : f32
    %177 = vector.broadcast %cst_26 : f32 to vector<8x96xf32>
    %178 = arith.addf %177, %176 : vector<8x96xf32>
    %179 = arith.divf %177, %178 : vector<8x96xf32>
    %180 = vector.extract_strided_slice %179 {offsets = [0, 0], sizes = [8, 32], strides = [1, 1]} : vector<8x96xf32> to vector<8x32xf32>
    %181 = vector.extract_strided_slice %179 {offsets = [0, 32], sizes = [8, 32], strides = [1, 1]} : vector<8x96xf32> to vector<8x32xf32>
    %182 = vector.extract_strided_slice %179 {offsets = [0, 64], sizes = [8, 32], strides = [1, 1]} : vector<8x96xf32> to vector<8x32xf32>
    %183 = vector.extract_strided_slice %173 {offsets = [0, 96], sizes = [8, 32], strides = [1, 1]} : vector<8x128xf32> to vector<8x32xf32>
    %184 = math.tanh %183 : vector<8x32xf32>
    %185 = arith.mulf %181, %170 : vector<8x32xf32>
    %186 = arith.mulf %180, %184 : vector<8x32xf32>
    %187 = arith.addf %185, %186 : vector<8x32xf32>
    %188 = math.tanh %187 : vector<8x32xf32>
    %189 = arith.mulf %182, %188 : vector<8x32xf32>
    %c7_i32 = arith.constant 7 : i32
    %190 = vector.broadcast %c7_i32 : i32 to vector<8x32xi32>
    %191 = arith.cmpi sgt, %7, %190 : vector<8x32xi32>
    %192 = arith.select %191, %189, %169 : vector<8x32xi1>, vector<8x32xf32>
    %c0_27 = arith.constant 0 : index
    %c0_28 = arith.constant 0 : index
    %193 = vector.load %arg5[%c0_27, %c0_28] : memref<32x128xf32, #tpu.memory_space<vmem>>, vector<32x128xf32>
    %cst_29 = arith.constant dense<0.000000e+00> : vector<8x128xf32>
    %194 = tpu.matmul %192, %193, %cst_29 {dimension_numbers = #tpu.dot_dimension_numbers<[1], [0], [0], [1], [0, 0, 1, 1], [], []>} : vector<8x32xf32>, vector<32x128xf32>, vector<8x128xf32> -> vector<8x128xf32>
    %c0_30 = arith.constant 0 : index
    %c0_31 = arith.constant 0 : index
    %195 = vector.load %arg6[%c0_30, %c0_31] : memref<1x128xf32, #tpu.memory_space<vmem>>, vector<1x128xf32>
    %196 = vector.broadcast %195 : vector<1x128xf32> to vector<8x128xf32>
    %197 = arith.addf %194, %196 : vector<8x128xf32>
    %c0_32 = arith.constant 0 : index
    %c0_33 = arith.constant 0 : index
    %198 = vector.load %arg7[%c0_32, %c0_33] : memref<8x128xf32, #tpu.memory_space<vmem>>, vector<8x128xf32>
    tpu.vector_store %arg7[%c0_32, %c0_33], %197 {strides = array<i32>} : memref<8x128xf32, #tpu.memory_space<vmem>>, vector<8x128xf32>,
    return
  }
}

</mosaic_0001>

<llo_original>
// kernel: rnn_model_forward.1
$region0: #{rnn_model_forward.1}
  #allocation0 [shape = 'u32[]', space=smem, size = 0x4, offset = 0x4, fixed_abs, tag = 'smem constant byte address 0x4 - core index']
  #allocation1 [shape = 'u32[72,128]{1,0:T(1,128)}', space=vmem, size = 0x9000, scoped, tag = 'internal scratch']
  %s0 = inlined_call_operand.vmem [shape: f32[64,3], index: 0, kind: input, shape index: {}]
  %s1 = inlined_call_operand.vmem [shape: s32[8,32], index: 1, kind: input, shape index: {}]
  %s2 = inlined_call_operand.vmem [shape: f32[3,128], index: 2, kind: input, shape index: {}]
  %s3 = inlined_call_operand.vmem [shape: f32[32,128], index: 3, kind: input, shape index: {}]
  %s4 = inlined_call_operand.vmem [shape: f32[1,128], index: 4, kind: input, shape index: {}]
  %s5 = inlined_call_operand.vmem [shape: f32[32,128], index: 5, kind: input, shape index: {}]
  %s6 = inlined_call_operand.vmem [shape: f32[1,128], index: 6, kind: input, shape index: {}]
  %s7 = inlined_call_operand.vmem [shape: f32[8,128], index: 7, kind: output, shape index: {}]
  %s8 = sld [smem:[#allocation0]]
  $region38: #{rnn_model_forward.1} parent=0
    _
  %s10 = ssub.s32 1, %s8
  %s11 = scalar_select 0, %s10, %s8
  // Predicated region
  $region2: #{rnn_model_forward.1} parent=0 // pred_check
    _
  $region3: #{rnn_model_forward.1} parent=0 // pred_check_branch
    %13 = sbr.rel (0) target = $region5
  $region4: #{rnn_model_forward.1} parent=0 // pred_region
    _
  $region5: #{rnn_model_forward.1} parent=0 // pred_fallthru
    _
  // Predicated region
  $region6: #{rnn_model_forward.1} parent=0 // pred_check
    _
  $region7: #{rnn_model_forward.1} parent=0 // pred_check_branch
    %15 = sbr.rel (0) target = $region9
  $region8: #{rnn_model_forward.1} parent=0 // pred_region
    _
  $region9: #{rnn_model_forward.1} parent=0 // pred_fallthru
    _
  // Predicated region
  $region10: #{rnn_model_forward.1} parent=0 // pred_check
    _
  $region11: #{rnn_model_forward.1} parent=0 // pred_check_branch
    %17 = sbr.rel (0) target = $region13
  $region12: #{rnn_model_forward.1} parent=0 // pred_region
    _
  $region13: #{rnn_model_forward.1} parent=0 // pred_fallthru
    _
  // Predicated region
  $region14: #{rnn_model_forward.1} parent=0 // pred_check
    _
  $region15: #{rnn_model_forward.1} parent=0 // pred_check_branch
    %19 = sbr.rel (0) target = $region17
  $region16: #{rnn_model_forward.1} parent=0 // pred_region
    _
  $region17: #{rnn_model_forward.1} parent=0 // pred_fallthru
    _
  // Predicated region
  $region18: #{rnn_model_forward.1} parent=0 // pred_check
    _
  $region19: #{rnn_model_forward.1} parent=0 // pred_check_branch
    %21 = sbr.rel (0) target = $region21
  $region20: #{rnn_model_forward.1} parent=0 // pred_region
    _
  $region21: #{rnn_model_forward.1} parent=0 // pred_fallthru
    _
  // Predicated region
  $region22: #{rnn_model_forward.1} parent=0 // pred_check
    _
  $region23: #{rnn_model_forward.1} parent=0 // pred_check_branch
    %23 = sbr.rel (0) target = $region25
  $region24: #{rnn_model_forward.1} parent=0 // pred_region
    _
  $region25: #{rnn_model_forward.1} parent=0 // pred_fallthru
    _
  // Predicated region
  $region26: #{rnn_model_forward.1} parent=0 // pred_check
    _
  $region27: #{rnn_model_forward.1} parent=0 // pred_check_branch
    %25 = sbr.rel (0) target = $region29
  $region28: #{rnn_model_forward.1} parent=0 // pred_region
    _
  $region29: #{rnn_model_forward.1} parent=0 // pred_fallthru
    _
  %v26 = vld [vmem:[%s0] sm:$0xff]
  %v27 = vld [vmem:[%s0 + $0x8] sm:$0xff]
  %v28 = vld [vmem:[%s0 + $0x10] sm:$0xff]
  %v29 = vld [vmem:[%s0 + $0x18] sm:$0xff]
  %v30 = vld [vmem:[%s0 + $0x20] sm:$0xff]
  %v31 = vld [vmem:[%s0 + $0x28] sm:$0xff]
  %v32 = vld [vmem:[%s0 + $0x30] sm:$0xff]
  %v33 = vld [vmem:[%s0 + $0x38] sm:$0xff]
  %v34 = vld [vmem:[%s2] sm:$0x7]
  %v35 = vld [vmem:[%s4] sm:$0x1]
  %v37 = vperm.slane %v35, 0
  %vm39 = vcmask 23552
  %v41 = vsel %vm39, %v26, 0
  %v44 = vsel %vm39, %v27, 0
  %v47 = vsel %vm39, %v28, 0
  %v50 = vsel %vm39, %v29, 0
  %v53 = vsel %vm39, %v30, 0
  %v56 = vsel %vm39, %v31, 0
  %v59 = vsel %vm39, %v32, 0
  %v62 = vsel %vm39, %v33, 0
  %vm64 = vcmask 1042432
  %v66 = vsel %vm64, %v34, 0
  %68 = vmatpush.msra.mxu0 0.0
  %69 = vmatpush.msra.mxu0 0.0
  %70 = vmatpush.msra.mxu0 0.0
  %71 = vmatpush.msra.mxu0 0.0
  %72 = vmatpush.msra.mxu0 0.0
  %73 = vmatpush.msra.mxu0 0.0
  %74 = vmatpush.msra.mxu0 0.0
  %75 = vmatpush.msra.mxu0 0.0
  %76 = vmatpush.msra.mxu0 0.0
  %77 = vmatpush.msra.mxu0 0.0
  %78 = vmatpush.msra.mxu0 0.0
  %79 = vmatpush.msra.mxu0 0.0
  %80 = vmatpush.msra.mxu0 0.0
  %81 = vmatpush.msra.mxu0 0.0
  %82 = vmatpush.msra.mxu0 0.0
  %83 = vmatpush.msra.mxu0 %v66
  %84 = vmatmul.f32.gmra.mxu0 %v41
  %v85 = vpop.f32.mrf.mxu0
  %v86 = vadd.f32 %v37, %v85
  %87 = vmatmul.f32.gmra.mxu0 %v44
  %v88 = vpop.f32.mrf.mxu0
  %v89 = vadd.f32 %v37, %v88
  %90 = vmatmul.f32.gmra.mxu0 %v47
  %v91 = vpop.f32.mrf.mxu0
  %v92 = vadd.f32 %v37, %v91
  %93 = vmatmul.f32.gmra.mxu0 %v50
  %v94 = vpop.f32.mrf.mxu0
  %v95 = vadd.f32 %v37, %v94
  %96 = vmatmul.f32.gmra.mxu0 %v53
  %v97 = vpop.f32.mrf.mxu0
  %v98 = vadd.f32 %v37, %v97
  %99 = vmatmul.f32.gmra.mxu0 %v56
  %v100 = vpop.f32.mrf.mxu0
  %v101 = vadd.f32 %v37, %v100
  %102 = vmatmul.f32.gmra.mxu0 %v59
  %v103 = vpop.f32.mrf.mxu0
  %v104 = vadd.f32 %v37, %v103
  %105 = vmatmul.f32.gmra.mxu0 %v62
  %v106 = vpop.f32.mrf.mxu0
  %v107 = vadd.f32 %v37, %v106
  %108 = vdwg.mxu0
  %v109 = vld [vmem:[%s3] sm:$0xff]
  %v110 = vld [vmem:[%s3 + $0x8] sm:$0xff]
  %v111 = vld [vmem:[%s3 + $0x10] sm:$0xff]
  %v112 = vld [vmem:[%s3 + $0x18] sm:$0xff]
  %v113 = vld [vmem:[%s1] sm:$0xff]
  %vm114 = vcmask 261120
  %v116 = vsel %vm114, 0.0, 0
  %118 = vmatpush.msra.mxu0 0.0
  %119 = vmatpush.msra.mxu0 0.0
  %120 = vmatpush.msra.mxu0 0.0
  %121 = vmatpush.msra.mxu0 0.0
  %122 = vmatpush.msra.mxu0 0.0
  %123 = vmatpush.msra.mxu0 0.0
  %124 = vmatpush.msra.mxu0 0.0
  %125 = vmatpush.msra.mxu0 0.0
  %126 = vmatpush.msra.mxu0 0.0
  %127 = vmatpush.msra.mxu0 0.0
  %128 = vmatpush.msra.mxu0 0.0
  %129 = vmatpush.msra.mxu0 0.0
  %130 = vmatpush.msra.mxu0 %v112
  %131 = vmatpush.msra.mxu0 %v111
  %132 = vmatpush.msra.mxu0 %v110
  %133 = vmatpush.msra.mxu0 %v109
  %134 = vmatmul.f32.gmra.mxu0 %v116
  %v135 = vpop.f32.mrf.mxu0
  %v136 = vadd.f32 0.0, %v135
  %137 = vdwg.mxu0
  %v138 = vadd.f32 %v86, %v136
  %v139 = vxor.u32 %v138, 2147483648
  %v140 = vmul.f32 %v139, 1.442695
  %v141 = vpow.pop %v140
  %v142 = vadd.f32 %v141, 1.0
  %v143 = vrcp.pop %v142
  %v144 = vmul.f32 %v142, %v143
  %v145 = vsub.f32 1.0, %v144
  %v146 = vmul.f32 %v143, %v145
  %v147 = vadd.f32 %v143, %v146
  %vm148 = vweird.f32 %v142
  %vm149 = vweird.f32 %v143
  %vm150 = vmor %vm148, %vm149
  %v151 = vsel %vm150, %v143, %v147
  %v152 = vand.u32 2147483647, %v142
  %vm153 = vcmp.eq.f32.partialorder %v152, 8.507059e+37
  %v154 = vand.u32 %v142, 2147483648
  %v155 = vor.u32 1.1754944e-38, %v154
  %v156 = vsel %vm153, %v155, %v151
  %v157 = vmul.f32 1.0, %v156
  %v158 = vtanh.pop %v138
  %v159 = vmul.f32 %v157, 0.0
  %161 = vrot.lane.b32.xlu0 %v158, 32
  %v162 = vpop.permute.xlu0 %161
  %v164 = vmul.f32 %v157, %v162
  %166 = vrot.lane.b32.xlu0 %v164, 32
  %v167 = vpop.permute.xlu0 %166
  %v169 = vadd.f32 %v159, %v167
  %v170 = vtanh.pop %v169
  %172 = vrot.lane.b32.xlu0 %v170, 32
  %v173 = vpop.permute.xlu0 %172
  %v175 = vmul.f32 %v157, %v173
  %vm176 = vcmp.gt.s32.totalorder %v113, 0
  %178 = vrot.lane.b32.xlu0 %v175, 64
  %v179 = vpop.permute.xlu0 %178
  %v181 = vsel %vm176, %v179, 0.0
  %183 = vrot.lane.b32.xlu0 %v169, 96
  %v184 = vpop.permute.xlu0 %183
  %v186 = vsel %vm176, %v184, 0.0
  %v188 = vsel %vm114, %v181, 0
  %190 = vmatpush.msra.mxu0 0.0
  %191 = vmatpush.msra.mxu0 0.0
  %192 = vmatpush.msra.mxu0 0.0
  %193 = vmatpush.msra.mxu0 0.0
  %194 = vmatpush.msra.mxu0 0.0
  %195 = vmatpush.msra.mxu0 0.0
  %196 = vmatpush.msra.mxu0 0.0
  %197 = vmatpush.msra.mxu0 0.0
  %198 = vmatpush.msra.mxu0 0.0
  %199 = vmatpush.msra.mxu0 0.0
  %200 = vmatpush.msra.mxu0 0.0
  %201 = vmatpush.msra.mxu0 0.0
  %202 = vmatpush.msra.mxu0 %v112
  %203 = vmatpush.msra.mxu0 %v111
  %204 = vmatpush.msra.mxu0 %v110
  %205 = vmatpush.msra.mxu0 %v109
  %206 = vmatmul.f32.gmra.mxu0 %v188
  %v207 = vpop.f32.mrf.mxu0
  %v208 = vadd.f32 0.0, %v207
  %209 = vdwg.mxu0
  %v210 = vadd.f32 %v89, %v208
  %v211 = vxor.u32 %v210, 2147483648
  %v212 = vmul.f32 %v211, 1.442695
  %v213 = vpow.pop %v212
  %v214 = vadd.f32 %v213, 1.0
  %v215 = vrcp.pop %v214
  %v216 = vmul.f32 %v214, %v215
  %v217 = vsub.f32 1.0, %v216
  %v218 = vmul.f32 %v215, %v217
  %v219 = vadd.f32 %v215, %v218
  %vm220 = vweird.f32 %v214
  %vm221 = vweird.f32 %v215
  %vm222 = vmor %vm220, %vm221
  %v223 = vsel %vm222, %v215, %v219
  %v224 = vand.u32 2147483647, %v214
  %vm225 = vcmp.eq.f32.partialorder %v224, 8.507059e+37
  %v226 = vand.u32 %v214, 2147483648
  %v227 = vor.u32 1.1754944e-38, %v226
  %v228 = vsel %vm225, %v227, %v223
  %v229 = vmul.f32 1.0, %v228
  %v230 = vtanh.pop %v210
  %232 = vrot.lane.b32.xlu0 %v186, 32
  %v233 = vpop.permute.xlu0 %232
  %v235 = vmul.f32 %v229, %v233
  %237 = vrot.lane.b32.xlu0 %v230, 32
  %v238 = vpop.permute.xlu0 %237
  %v240 = vmul.f32 %v229, %v238
  %242 = vrot.lane.b32.xlu0 %v240, 32
  %v243 = vpop.permute.xlu0 %242
  %v245 = vadd.f32 %v235, %v243
  %v246 = vtanh.pop %v245
  %248 = vrot.lane.b32.xlu0 %v246, 32
  %v249 = vpop.permute.xlu0 %248
  %v251 = vmul.f32 %v229, %v249
  %vm252 = vcmp.gt.s32.totalorder %v113, 1
  %254 = vrot.lane.b32.xlu0 %v251, 64
  %v255 = vpop.permute.xlu0 %254
  %v257 = vsel %vm252, %v255, %v181
  %259 = vrot.lane.b32.xlu0 %v245, 96
  %v260 = vpop.permute.xlu0 %259
  %v262 = vsel %vm252, %v260, %v186
  %v264 = vsel %vm114, %v257, 0
  %266 = vmatpush.msra.mxu0 0.0
  %267 = vmatpush.msra.mxu0 0.0
  %268 = vmatpush.msra.mxu0 0.0
  %269 = vmatpush.msra.mxu0 0.0
  %270 = vmatpush.msra.mxu0 0.0
  %271 = vmatpush.msra.mxu0 0.0
  %272 = vmatpush.msra.mxu0 0.0
  %273 = vmatpush.msra.mxu0 0.0
  %274 = vmatpush.msra.mxu0 0.0
  %275 = vmatpush.msra.mxu0 0.0
  %276 = vmatpush.msra.mxu0 0.0
  %277 = vmatpush.msra.mxu0 0.0
  %278 = vmatpush.msra.mxu0 %v112
  %279 = vmatpush.msra.mxu0 %v111
  %280 = vmatpush.msra.mxu0 %v110
  %281 = vmatpush.msra.mxu0 %v109
  %282 = vmatmul.f32.gmra.mxu0 %v264
  %v283 = vpop.f32.mrf.mxu0
  %v284 = vadd.f32 0.0, %v283
  %285 = vdwg.mxu0
  %v286 = vadd.f32 %v92, %v284
  %v287 = vxor.u32 %v286, 2147483648
  %v288 = vmul.f32 %v287, 1.442695
  %v289 = vpow.pop %v288
  %v290 = vadd.f32 %v289, 1.0
  %v291 = vrcp.pop %v290
  %v292 = vmul.f32 %v290, %v291
  %v293 = vsub.f32 1.0, %v292
  %v294 = vmul.f32 %v291, %v293
  %v295 = vadd.f32 %v291, %v294
  %vm296 = vweird.f32 %v290
  %vm297 = vweird.f32 %v291
  %vm298 = vmor %vm296, %vm297
  %v299 = vsel %vm298, %v291, %v295
  %v300 = vand.u32 2147483647, %v290
  %vm301 = vcmp.eq.f32.partialorder %v300, 8.507059e+37
  %v302 = vand.u32 %v290, 2147483648
  %v303 = vor.u32 1.1754944e-38, %v302
  %v304 = vsel %vm301, %v303, %v299
  %v305 = vmul.f32 1.0, %v304
  %v306 = vtanh.pop %v286
  %308 = vrot.lane.b32.xlu0 %v262, 32
  %v309 = vpop.permute.xlu0 %308
  %v311 = vmul.f32 %v305, %v309
  %313 = vrot.lane.b32.xlu0 %v306, 32
  %v314 = vpop.permute.xlu0 %313
  %v316 = vmul.f32 %v305, %v314
  %318 = vrot.lane.b32.xlu0 %v316, 32
  %v319 = vpop.permute.xlu0 %318
  %v321 = vadd.f32 %v311, %v319
  %v322 = vtanh.pop %v321
  %324 = vrot.lane.b32.xlu0 %v322, 32
  %v325 = vpop.permute.xlu0 %324
  %v327 = vmul.f32 %v305, %v325
  %vm328 = vcmp.gt.s32.totalorder %v113, 2
  %330 = vrot.lane.b32.xlu0 %v327, 64
  %v331 = vpop.permute.xlu0 %330
  %v333 = vsel %vm328, %v331, %v257
  %335 = vrot.lane.b32.xlu0 %v321, 96
  %v336 = vpop.permute.xlu0 %335
  %v338 = vsel %vm328, %v336, %v262
  %v340 = vsel %vm114, %v333, 0
  %342 = vmatpush.msra.mxu0 0.0
  %343 = vmatpush.msra.mxu0 0.0
  %344 = vmatpush.msra.mxu0 0.0
  %345 = vmatpush.msra.mxu0 0.0
  %346 = vmatpush.msra.mxu0 0.0
  %347 = vmatpush.msra.mxu0 0.0
  %348 = vmatpush.msra.mxu0 0.0
  %349 = vmatpush.msra.mxu0 0.0
  %350 = vmatpush.msra.mxu0 0.0
  %351 = vmatpush.msra.mxu0 0.0
  %352 = vmatpush.msra.mxu0 0.0
  %353 = vmatpush.msra.mxu0 0.0
  %354 = vmatpush.msra.mxu0 %v112
  %355 = vmatpush.msra.mxu0 %v111
  %356 = vmatpush.msra.mxu0 %v110
  %357 = vmatpush.msra.mxu0 %v109
  %358 = vmatmul.f32.gmra.mxu0 %v340
  %v359 = vpop.f32.mrf.mxu0
  %v360 = vadd.f32 0.0, %v359
  %361 = vdwg.mxu0
  %v362 = vadd.f32 %v95, %v360
  %v363 = vxor.u32 %v362, 2147483648
  %v364 = vmul.f32 %v363, 1.442695
  %v365 = vpow.pop %v364
  %v366 = vadd.f32 %v365, 1.0
  %v367 = vrcp.pop %v366
  %v368 = vmul.f32 %v366, %v367
  %v369 = vsub.f32 1.0, %v368
  %v370 = vmul.f32 %v367, %v369
  %v371 = vadd.f32 %v367, %v370
  %vm372 = vweird.f32 %v366
  %vm373 = vweird.f32 %v367
  %vm374 = vmor %vm372, %vm373
  %v375 = vsel %vm374, %v367, %v371
  %v376 = vand.u32 2147483647, %v366
  %vm377 = vcmp.eq.f32.partialorder %v376, 8.507059e+37
  %v378 = vand.u32 %v366, 2147483648
  %v379 = vor.u32 1.1754944e-38, %v378
  %v380 = vsel %vm377, %v379, %v375
  %v381 = vmul.f32 1.0, %v380
  %v382 = vtanh.pop %v362
  %384 = vrot.lane.b32.xlu0 %v338, 32
  %v385 = vpop.permute.xlu0 %384
  %v387 = vmul.f32 %v381, %v385
  %389 = vrot.lane.b32.xlu0 %v382, 32
  %v390 = vpop.permute.xlu0 %389
  %v392 = vmul.f32 %v381, %v390
  %394 = vrot.lane.b32.xlu0 %v392, 32
  %v395 = vpop.permute.xlu0 %394
  %v397 = vadd.f32 %v387, %v395
  %v398 = vtanh.pop %v397
  %400 = vrot.lane.b32.xlu0 %v398, 32
  %v401 = vpop.permute.xlu0 %400
  %v403 = vmul.f32 %v381, %v401
  %vm404 = vcmp.gt.s32.totalorder %v113, 3
  %406 = vrot.lane.b32.xlu0 %v403, 64
  %v407 = vpop.permute.xlu0 %406
  %v409 = vsel %vm404, %v407, %v333
  %411 = vrot.lane.b32.xlu0 %v397, 96
  %v412 = vpop.permute.xlu0 %411
  %v414 = vsel %vm404, %v412, %v338
  %v416 = vsel %vm114, %v409, 0
  %418 = vmatpush.msra.mxu0 0.0
  %419 = vmatpush.msra.mxu0 0.0
  %420 = vmatpush.msra.mxu0 0.0
  %421 = vmatpush.msra.mxu0 0.0
  %422 = vmatpush.msra.mxu0 0.0
  %423 = vmatpush.msra.mxu0 0.0
  %424 = vmatpush.msra.mxu0 0.0
  %425 = vmatpush.msra.mxu0 0.0
  %426 = vmatpush.msra.mxu0 0.0
  %427 = vmatpush.msra.mxu0 0.0
  %428 = vmatpush.msra.mxu0 0.0
  %429 = vmatpush.msra.mxu0 0.0
  %430 = vmatpush.msra.mxu0 %v112
  %431 = vmatpush.msra.mxu0 %v111
  %432 = vmatpush.msra.mxu0 %v110
  %433 = vmatpush.msra.mxu0 %v109
  %434 = vmatmul.f32.gmra.mxu0 %v416
  %v435 = vpop.f32.mrf.mxu0
  %v436 = vadd.f32 0.0, %v435
  %437 = vdwg.mxu0
  %v438 = vadd.f32 %v98, %v436
  %v439 = vxor.u32 %v438, 2147483648
  %v440 = vmul.f32 %v439, 1.442695
  %v441 = vpow.pop %v440
  %v442 = vadd.f32 %v441, 1.0
  %v443 = vrcp.pop %v442
  %v444 = vmul.f32 %v442, %v443
  %v445 = vsub.f32 1.0, %v444
  %v446 = vmul.f32 %v443, %v445
  %v447 = vadd.f32 %v443, %v446
  %vm448 = vweird.f32 %v442
  %vm449 = vweird.f32 %v443
  %vm450 = vmor %vm448, %vm449
  %v451 = vsel %vm450, %v443, %v447
  %v452 = vand.u32 2147483647, %v442
  %vm453 = vcmp.eq.f32.partialorder %v452, 8.507059e+37
  %v454 = vand.u32 %v442, 2147483648
  %v455 = vor.u32 1.1754944e-38, %v454
  %v456 = vsel %vm453, %v455, %v451
  %v457 = vmul.f32 1.0, %v456
  %v458 = vtanh.pop %v438
  %460 = vrot.lane.b32.xlu0 %v414, 32
  %v461 = vpop.permute.xlu0 %460
  %v463 = vmul.f32 %v457, %v461
  %465 = vrot.lane.b32.xlu0 %v458, 32
  %v466 = vpop.permute.xlu0 %465
  %v468 = vmul.f32 %v457, %v466
  %470 = vrot.lane.b32.xlu0 %v468, 32
  %v471 = vpop.permute.xlu0 %470
  %v473 = vadd.f32 %v463, %v471
  %v474 = vtanh.pop %v473
  %476 = vrot.lane.b32.xlu0 %v474, 32
  %v477 = vpop.permute.xlu0 %476
  %v479 = vmul.f32 %v457, %v477
  %vm480 = vcmp.gt.s32.totalorder %v113, 4
  %482 = vrot.lane.b32.xlu0 %v479, 64
  %v483 = vpop.permute.xlu0 %482
  %v485 = vsel %vm480, %v483, %v409
  %487 = vrot.lane.b32.xlu0 %v473, 96
  %v488 = vpop.permute.xlu0 %487
  %v490 = vsel %vm480, %v488, %v414
  %v492 = vsel %vm114, %v485, 0
  %494 = vmatpush.msra.mxu0 0.0
  %495 = vmatpush.msra.mxu0 0.0
  %496 = vmatpush.msra.mxu0 0.0
  %497 = vmatpush.msra.mxu0 0.0
  %498 = vmatpush.msra.mxu0 0.0
  %499 = vmatpush.msra.mxu0 0.0
  %500 = vmatpush.msra.mxu0 0.0
  %501 = vmatpush.msra.mxu0 0.0
  %502 = vmatpush.msra.mxu0 0.0
  %503 = vmatpush.msra.mxu0 0.0
  %504 = vmatpush.msra.mxu0 0.0
  %505 = vmatpush.msra.mxu0 0.0
  %506 = vmatpush.msra.mxu0 %v112
  %507 = vmatpush.msra.mxu0 %v111
  %508 = vmatpush.msra.mxu0 %v110
  %509 = vmatpush.msra.mxu0 %v109
  %510 = vmatmul.f32.gmra.mxu0 %v492
  %v511 = vpop.f32.mrf.mxu0
  %v512 = vadd.f32 0.0, %v511
  %513 = vdwg.mxu0
  %v514 = vadd.f32 %v101, %v512
  %v515 = vxor.u32 %v514, 2147483648
  %v516 = vmul.f32 %v515, 1.442695
  %v517 = vpow.pop %v516
  %v518 = vadd.f32 %v517, 1.0
  %v519 = vrcp.pop %v518
  %v520 = vmul.f32 %v518, %v519
  %v521 = vsub.f32 1.0, %v520
  %v522 = vmul.f32 %v519, %v521
  %v523 = vadd.f32 %v519, %v522
  %vm524 = vweird.f32 %v518
  %vm525 = vweird.f32 %v519
  %vm526 = vmor %vm524, %vm525
  %v527 = vsel %vm526, %v519, %v523
  %v528 = vand.u32 2147483647, %v518
  %vm529 = vcmp.eq.f32.partialorder %v528, 8.507059e+37
  %v530 = vand.u32 %v518, 2147483648
  %v531 = vor.u32 1.1754944e-38, %v530
  %v532 = vsel %vm529, %v531, %v527
  %v533 = vmul.f32 1.0, %v532
  %v534 = vtanh.pop %v514
  %536 = vrot.lane.b32.xlu0 %v490, 32
  %v537 = vpop.permute.xlu0 %536
  %v539 = vmul.f32 %v533, %v537
  %541 = vrot.lane.b32.xlu0 %v534, 32
  %v542 = vpop.permute.xlu0 %541
  %v544 = vmul.f32 %v533, %v542
  %546 = vrot.lane.b32.xlu0 %v544, 32
  %v547 = vpop.permute.xlu0 %546
  %v549 = vadd.f32 %v539, %v547
  %v550 = vtanh.pop %v549
  %552 = vrot.lane.b32.xlu0 %v550, 32
  %v553 = vpop.permute.xlu0 %552
  %v555 = vmul.f32 %v533, %v553
  %vm556 = vcmp.gt.s32.totalorder %v113, 5
  %558 = vrot.lane.b32.xlu0 %v555, 64
  %v559 = vpop.permute.xlu0 %558
  %v561 = vsel %vm556, %v559, %v485
  %563 = vrot.lane.b32.xlu0 %v549, 96
  %v564 = vpop.permute.xlu0 %563
  %v566 = vsel %vm556, %v564, %v490
  %v568 = vsel %vm114, %v561, 0
  %570 = vmatpush.msra.mxu0 0.0
  %571 = vmatpush.msra.mxu0 0.0
  %572 = vmatpush.msra.mxu0 0.0
  %573 = vmatpush.msra.mxu0 0.0
  %574 = vmatpush.msra.mxu0 0.0
  %575 = vmatpush.msra.mxu0 0.0
  %576 = vmatpush.msra.mxu0 0.0
  %577 = vmatpush.msra.mxu0 0.0
  %578 = vmatpush.msra.mxu0 0.0
  %579 = vmatpush.msra.mxu0 0.0
  %580 = vmatpush.msra.mxu0 0.0
  %581 = vmatpush.msra.mxu0 0.0
  %582 = vmatpush.msra.mxu0 %v112
  %583 = vmatpush.msra.mxu0 %v111
  %584 = vmatpush.msra.mxu0 %v110
  %585 = vmatpush.msra.mxu0 %v109
  %586 = vmatmul.f32.gmra.mxu0 %v568
  %v587 = vpop.f32.mrf.mxu0
  %v588 = vadd.f32 0.0, %v587
  %589 = vdwg.mxu0
  %v590 = vadd.f32 %v104, %v588
  %v591 = vxor.u32 %v590, 2147483648
  %v592 = vmul.f32 %v591, 1.442695
  %v593 = vpow.pop %v592
  %v594 = vadd.f32 %v593, 1.0
  %v595 = vrcp.pop %v594
  %v596 = vmul.f32 %v594, %v595
  %v597 = vsub.f32 1.0, %v596
  %v598 = vmul.f32 %v595, %v597
  %v599 = vadd.f32 %v595, %v598
  %vm600 = vweird.f32 %v594
  %vm601 = vweird.f32 %v595
  %vm602 = vmor %vm600, %vm601
  %v603 = vsel %vm602, %v595, %v599
  %v604 = vand.u32 2147483647, %v594
  %vm605 = vcmp.eq.f32.partialorder %v604, 8.507059e+37
  %v606 = vand.u32 %v594, 2147483648
  %v607 = vor.u32 1.1754944e-38, %v606
  %v608 = vsel %vm605, %v607, %v603
  %v609 = vmul.f32 1.0, %v608
  %v610 = vtanh.pop %v590
  %612 = vrot.lane.b32.xlu0 %v566, 32
  %v613 = vpop.permute.xlu0 %612
  %v615 = vmul.f32 %v609, %v613
  %617 = vrot.lane.b32.xlu0 %v610, 32
  %v618 = vpop.permute.xlu0 %617
  %v620 = vmul.f32 %v609, %v618
  %622 = vrot.lane.b32.xlu0 %v620, 32
  %v623 = vpop.permute.xlu0 %622
  %v625 = vadd.f32 %v615, %v623
  %v626 = vtanh.pop %v625
  %628 = vrot.lane.b32.xlu0 %v626, 32
  %v629 = vpop.permute.xlu0 %628
  %v631 = vmul.f32 %v609, %v629
  %vm632 = vcmp.gt.s32.totalorder %v113, 6
  %634 = vrot.lane.b32.xlu0 %v631, 64
  %v635 = vpop.permute.xlu0 %634
  %v637 = vsel %vm632, %v635, %v561
  %639 = vrot.lane.b32.xlu0 %v625, 96
  %v640 = vpop.permute.xlu0 %639
  %v642 = vsel %vm632, %v640, %v566
  %v644 = vsel %vm114, %v637, 0
  %646 = vmatpush.msra.mxu0 0.0
  %647 = vmatpush.msra.mxu0 0.0
  %648 = vmatpush.msra.mxu0 0.0
  %649 = vmatpush.msra.mxu0 0.0
  %650 = vmatpush.msra.mxu0 0.0
  %651 = vmatpush.msra.mxu0 0.0
  %652 = vmatpush.msra.mxu0 0.0
  %653 = vmatpush.msra.mxu0 0.0
  %654 = vmatpush.msra.mxu0 0.0
  %655 = vmatpush.msra.mxu0 0.0
  %656 = vmatpush.msra.mxu0 0.0
  %657 = vmatpush.msra.mxu0 0.0
  %658 = vmatpush.msra.mxu0 %v112
  %659 = vmatpush.msra.mxu0 %v111
  %660 = vmatpush.msra.mxu0 %v110
  %661 = vmatpush.msra.mxu0 %v109
  %662 = vmatmul.f32.gmra.mxu0 %v644
  %v663 = vpop.f32.mrf.mxu0
  %v664 = vadd.f32 0.0, %v663
  %665 = vdwg.mxu0
  %v666 = vadd.f32 %v107, %v664
  %v667 = vxor.u32 %v666, 2147483648
  %v668 = vmul.f32 %v667, 1.442695
  %v669 = vpow.pop %v668
  %v670 = vadd.f32 %v669, 1.0
  %v671 = vrcp.pop %v670
  %v672 = vmul.f32 %v670, %v671
  %v673 = vsub.f32 1.0, %v672
  %v674 = vmul.f32 %v671, %v673
  %v675 = vadd.f32 %v671, %v674
  %vm676 = vweird.f32 %v670
  %vm677 = vweird.f32 %v671
  %vm678 = vmor %vm676, %vm677
  %v679 = vsel %vm678, %v671, %v675
  %v680 = vand.u32 2147483647, %v670
  %vm681 = vcmp.eq.f32.partialorder %v680, 8.507059e+37
  %v682 = vand.u32 %v670, 2147483648
  %v683 = vor.u32 1.1754944e-38, %v682
  %v684 = vsel %vm681, %v683, %v679
  %v685 = vmul.f32 1.0, %v684
  %v686 = vtanh.pop %v666
  %688 = vrot.lane.b32.xlu0 %v642, 32
  %v689 = vpop.permute.xlu0 %688
  %v691 = vmul.f32 %v685, %v689
  %693 = vrot.lane.b32.xlu0 %v686, 32
  %v694 = vpop.permute.xlu0 %693
  %v696 = vmul.f32 %v685, %v694
  %698 = vrot.lane.b32.xlu0 %v696, 32
  %v699 = vpop.permute.xlu0 %698
  %v701 = vadd.f32 %v691, %v699
  %v702 = vtanh.pop %v701
  %704 = vrot.lane.b32.xlu0 %v702, 32
  %v705 = vpop.permute.xlu0 %704
  %v707 = vmul.f32 %v685, %v705
  %vm708 = vcmp.gt.s32.totalorder %v113, 7
  %710 = vrot.lane.b32.xlu0 %v707, 64
  %v711 = vpop.permute.xlu0 %710
  %v713 = vsel %vm708, %v711, %v637
  %v714 = vld [vmem:[%s5] sm:$0xff]
  %v715 = vld [vmem:[%s5 + $0x8] sm:$0xff]
  %v716 = vld [vmem:[%s5 + $0x10] sm:$0xff]
  %v717 = vld [vmem:[%s5 + $0x18] sm:$0xff]
  %v718 = vld [vmem:[%s6] sm:$0x1]
  %v720 = vperm.slane %v718, 0
  %v723 = vsel %vm114, %v713, 0
  %725 = vmatpush.msra.mxu0 0.0
  %726 = vmatpush.msra.mxu0 0.0
  %727 = vmatpush.msra.mxu0 0.0
  %728 = vmatpush.msra.mxu0 0.0
  %729 = vmatpush.msra.mxu0 0.0
  %730 = vmatpush.msra.mxu0 0.0
  %731 = vmatpush.msra.mxu0 0.0
  %732 = vmatpush.msra.mxu0 0.0
  %733 = vmatpush.msra.mxu0 0.0
  %734 = vmatpush.msra.mxu0 0.0
  %735 = vmatpush.msra.mxu0 0.0
  %736 = vmatpush.msra.mxu0 0.0
  %737 = vmatpush.msra.mxu0 %v717
  %738 = vmatpush.msra.mxu0 %v716
  %739 = vmatpush.msra.mxu0 %v715
  %740 = vmatpush.msra.mxu0 %v714
  %741 = vmatmul.f32.gmra.mxu0 %v723
  %v742 = vpop.f32.mrf.mxu0
  %v743 = vadd.f32 %v720, %v742
  %744 = vdwg.mxu0
  %745 = vst [vmem:[%s7] sm:$0xff] %v743
  // Predicated region
  $region30: #{rnn_model_forward.1} parent=0 // pred_check
    _
  $region31: #{rnn_model_forward.1} parent=0 // pred_check_branch
    %747 = sbr.rel (0) target = $region33
  $region32: #{rnn_model_forward.1} parent=0 // pred_region
    _
  $region33: #{rnn_model_forward.1} parent=0 // pred_fallthru
    _
  // Predicated region
  $region34: #{rnn_model_forward.1} parent=0 // pred_check
    _
  $region35: #{rnn_model_forward.1} parent=0 // pred_check_branch
    %749 = sbr.rel (0) target = $region37
  $region36: #{rnn_model_forward.1} parent=0 // pred_region
    _
  $region37: #{rnn_model_forward.1} parent=0 // pred_fallthru
    _

</llo_original>
